<compile_context>
chip_gen: v7x
topology: tpu7x:2x2x1
jax: 0.10.0
libtpu: 0.0.40
codegen_flags: <defaults>
</compile_context>

<pallas_src>
import functools

import jax
import jax.numpy as jnp
from jax.experimental import pallas as pl
from jax.experimental.pallas import tpu as pltpu


def _vmem_capacity_bytes():
    """Physical VMEM per TensorCore, with a conservative fallback."""
    try:
        info = pltpu.get_tpu_info()
        cap = getattr(info, "vmem_capacity_bytes", None)
        if cap:
            return int(cap)
    except Exception:
        pass
    return 64 * 1024 * 1024  # conservative (v7x per-TC size)


def _dual_avg_pool_kernel(f1_ref, f2_ref, p1_ref, p2_ref, *,
                          inv_hw, hw_total, hw_tile):
    """Fused global-average-pool of two feature maps.

    Grid axes: (batch blocks [parallel], channel blocks [parallel],
                spatial reduction blocks [arbitrary, usually size 1]).
    Output blocks (Bt, Ct) are resident across the reduction axis and act as
    f32 accumulators; the 1/(H*W) scale runs once on the last step.
    """
    k = pl.program_id(2)
    nk = pl.num_programs(2)

    @pl.when(k == 0)
    def _init():
        p1_ref[...] = jnp.zeros_like(p1_ref)
        p2_ref[...] = jnp.zeros_like(p2_ref)

    def _accum(t1, t2):
        # f32 accumulation regardless of the streamed feature dtype.
        p1_ref[...] += jnp.sum(t1, axis=2)
        p2_ref[...] += jnp.sum(t2, axis=2)

    if hw_total % hw_tile != 0:
        # HW was split and does not divide evenly: mask the padded tail, but
        # only on the last reduction step (all other steps take the cheap path).
        @pl.when(k < nk - 1)
        def _full_steps():
            _accum(f1_ref[...].astype(jnp.float32),
                   f2_ref[...].astype(jnp.float32))

        @pl.when(k == nk - 1)
        def _tail_step():
            pos = k * hw_tile + jax.lax.broadcasted_iota(
                jnp.int32, (1, 1, hw_tile), 2)
            valid = pos < hw_total
            _accum(jnp.where(valid, f1_ref[...].astype(jnp.float32), 0.0),
                   jnp.where(valid, f2_ref[...].astype(jnp.float32), 0.0))
    else:
        _accum(f1_ref[...].astype(jnp.float32),
               f2_ref[...].astype(jnp.float32))

    @pl.when(k == nk - 1)
    def _finalize():
        p1_ref[...] *= inv_hw
        p2_ref[...] *= inv_hw


def aet_head_forward(feat1, feat2, w1, b1, w2, b2, *,
                     bt=None, ct=None, hw_tile=None):
    """AET_head forward.

    feat1/feat2: (B, C, H, W); w1: (H1, 2C); b1: (H1,); w2: (NC, H1); b2: (NC,).
    Returns (B, NC) float32.
    """
    B, C, H, W = feat1.shape
    assert feat2.shape == feat1.shape
    H1, indim = w1.shape
    NC, H1b = w2.shape
    assert indim == 2 * C and H1b == H1

    HW = H * W
    # Contiguous reshape is free; stream the feature maps at native dtype
    # (bf16 stays bf16 -> half the HBM traffic); the kernel accumulates in f32.
    f1 = feat1.reshape(B, C, HW)
    f2 = feat2.reshape(B, C, HW)
    itemsize = f1.dtype.itemsize

    # ---- generation-aware tile budget --------------------------------------
    vmem_cap = _vmem_capacity_bytes()
    tile_budget = max(vmem_cap // 16, 1 << 20)   # ~8 MiB v5e/v6e, ~4 MiB v7x

    # ---- batch tile ---------------------------------------------------------
    if bt is None:
        Bt = B if B <= 8 else 8
    else:
        Bt = bt
    assert Bt == B or (Bt % 8 == 0 and 0 < Bt <= B)
    nb = pl.cdiv(B, Bt)

    # ---- channel tile (preferred over spatial tiling: contiguous DMA rows) --
    if ct is None:
        Ct = C
        if Bt * C * HW * itemsize > tile_budget and C > 128:
            fit = (tile_budget // (Bt * HW * itemsize)) // 128 * 128
            Ct = min(max(128, fit), max(128, (C // 128) * 128))
        elif (nb == 1 and C % 256 == 0
              and Bt * C * HW * itemsize >= (2 << 20)):
            # Small batch, large slab: split channels into >=2 parallel blocks
            # so both v7x TensorCores get work (no-op on single-TC v5e/v6e).
            Ct = C // 2
    else:
        Ct = ct
    assert Ct == C or (Ct % 128 == 0 and 0 < Ct <= C)
    ncb = pl.cdiv(C, Ct)

    # ---- spatial tile: only if a single (Bt, Ct, HW) slab still doesn't fit -
    if hw_tile is None:
        hw_tile = HW
        if Bt * Ct * HW * itemsize > tile_budget:
            # Keep each DMA row >= ~2 KiB to avoid short strided transfers.
            min_rows = max(128, ((2048 // itemsize + 127) // 128) * 128)
            fit = (tile_budget // (Bt * Ct * itemsize)) // 128 * 128
            hw_tile = min(max(min_rows, fit), HW)
    assert hw_tile == HW or (hw_tile % 128 == 0 and 0 < hw_tile < HW)
    nk = pl.cdiv(HW, hw_tile)

    # ---- VMEM accounting (includes in-kernel f32 cast temporaries) ----------
    tile_bytes = Bt * Ct * hw_tile * itemsize
    f32_tmp_bytes = 2 * Bt * Ct * hw_tile * 4      # .astype / mask temporaries
    out_block_bytes = 2 * 2 * Bt * Ct * 4          # two pooled output blocks
    vmem_needed = 2 * 2 * tile_bytes + f32_tmp_bytes + out_block_bytes
    vmem_limit = int(min(int(vmem_cap * 0.8),
                         max(32 * 1024 * 1024, 2 * vmem_needed + (4 << 20))))

    cost = pl.CostEstimate(
        flops=2 * B * C * HW + 4 * B * C,
        transcendentals=0,
        bytes_accessed=2 * B * C * HW * itemsize + 2 * B * C * 4,
    )

    kernel = functools.partial(
        _dual_avg_pool_kernel,
        inv_hw=1.0 / float(HW), hw_total=HW, hw_tile=hw_tile)

    grid_spec = pltpu.PrefetchScalarGridSpec(
        num_scalar_prefetch=0,
        grid=(nb, ncb, nk),
        in_specs=[
            pl.BlockSpec((Bt, Ct, hw_tile), lambda b, c, k: (b, c, k)),
            pl.BlockSpec((Bt, Ct, hw_tile), lambda b, c, k: (b, c, k)),
        ],
        out_specs=[
            pl.BlockSpec((Bt, Ct), lambda b, c, k: (b, c)),
            pl.BlockSpec((Bt, Ct), lambda b, c, k: (b, c)),
        ],
    )

    pooled1, pooled2 = pl.pallas_call(
        kernel,
        out_shape=(jax.ShapeDtypeStruct((B, C), jnp.float32),
                   jax.ShapeDtypeStruct((B, C), jnp.float32)),
        grid_spec=grid_spec,
        compiler_params=pltpu.CompilerParams(
            dimension_semantics=("parallel", "parallel", "arbitrary"),
            vmem_limit_bytes=vmem_limit,
        ),
        cost_estimate=cost,
    )(f1, f2)

    # fc1(cat(p1, p2)) + fc2: a few kFLOPs — plain XLA GEMMs in the wrapper,
    # as recommended by the performance review (VMEM relief, better MXU shapes).
    x = jnp.concatenate([pooled1, pooled2], axis=1)          # (B, 2C) f32
    h = x @ jnp.transpose(w1).astype(jnp.float32) + b1.astype(jnp.float32)
    y = h @ jnp.transpose(w2).astype(jnp.float32) + b2.astype(jnp.float32)
    return y


if __name__ == "__main__":
    key = jax.random.PRNGKey(0)

    def make_params(pkey, C, hidden, num_classes):
        ka, kb = jax.random.split(pkey)
        w1 = jax.random.normal(ka, (hidden, 2 * C), dtype=jnp.float32) * 0.02
        b1 = jnp.zeros((hidden,), jnp.float32)   # module zeroes Linear biases
        w2 = jax.random.normal(kb, (num_classes, hidden), dtype=jnp.float32) * 0.02
        b2 = jnp.zeros((num_classes,), jnp.float32)
        return w1, b1, w2, b2

    def ref_forward(f1, f2, w1, b1, w2, b2):
        B, C = f1.shape[0], f1.shape[1]
        p1 = f1.reshape(B, C, -1).astype(jnp.float32).mean(axis=-1)
        p2 = f2.reshape(B, C, -1).astype(jnp.float32).mean(axis=-1)
        x = jnp.concatenate([p1, p2], axis=1)
        return (x @ w1.T + b1) @ w2.T + b2

    # --- Case 1: small AET_head shapes, single-slab fast path (nk = 1). ------
    B, C, H, W = 2, 32, 14, 14
    hidden, num_classes = (2 * C) // 2, 4
    k1, k2, kp = jax.random.split(key, 3)
    feat1 = jax.random.normal(k1, (B, C, H, W), dtype=jnp.float32)
    feat2 = jax.random.normal(k2, (B, C, H, W), dtype=jnp.float32)
    w1, b1, w2, b2 = make_params(kp, C, hidden, num_classes)

    out = jax.block_until_ready(aet_head_forward(feat1, feat2, w1, b1, w2, b2))
    ref = ref_forward(feat1, feat2, w1, b1, w2, b2)
    assert out.shape == (B, num_classes)
    assert jnp.allclose(out, ref, atol=1e-5, rtol=1e-5), "case 1 mismatch"

    # --- Case 2: forced spatial split (hw_tile=128 < HW=196) with tail mask. -
    out2 = jax.block_until_ready(
        aet_head_forward(feat1, feat2, w1, b1, w2, b2, hw_tile=128))
    assert jnp.allclose(out2, ref, atol=1e-5, rtol=1e-5), "case 2 mismatch"

    # --- Case 3: bf16 feature maps stream at native width; f32 accumulation. -
    f1b = feat1.astype(jnp.bfloat16)
    f2b = feat2.astype(jnp.bfloat16)
    out3 = jax.block_until_ready(aet_head_forward(f1b, f2b, w1, b1, w2, b2))
    ref3 = ref_forward(f1b, f2b, w1, b1, w2, b2)
    assert jnp.allclose(out3, ref3, atol=2e-3, rtol=2e-3), "case 3 mismatch"

    # --- Case 4: channel tiling (ct=128 over C=192 -> partial last channel
    #             block) plus a partial last batch block (B=10, Bt=8). --------
    B4, C4, H4, W4 = 10, 192, 9, 9
    hidden4, nc4 = (2 * C4) // 2, 4
    k5, k6, kp4 = jax.random.split(jax.random.PRNGKey(1), 3)
    f1_4 = jax.random.normal(k5, (B4, C4, H4, W4), dtype=jnp.float32)
    f2_4 = jax.random.normal(k6, (B4, C4, H4, W4), dtype=jnp.float32)
    w1_4, b1_4, w2_4, b2_4 = make_params(kp4, C4, hidden4, nc4)
    out4 = jax.block_until_ready(
        aet_head_forward(f1_4, f2_4, w1_4, b1_4, w2_4, b2_4, ct=128))
    ref4 = ref_forward(f1_4, f2_4, w1_4, b1_4, w2_4, b2_4)
    assert out4.shape == (B4, nc4)
    assert jnp.allclose(out4, ref4, atol=1e-4, rtol=1e-4), "case 4 mismatch"

    print("KERNEL_OK")
</pallas_src>

<mosaic_0001>
module attributes {stable_mosaic.version = 11 : i64} {
  func.func @_dual_avg_pool_kernel(%arg0: i32, %arg1: i32, %arg2: i32, %arg3: memref<2x32x196xf32, #tpu.memory_space<vmem>>, %arg4: memref<2x32x196xf32, #tpu.memory_space<vmem>>, %arg5: memref<2x32xf32, #tpu.memory_space<vmem>>, %arg6: memref<2x32xf32, #tpu.memory_space<vmem>>) attributes {dimension_semantics = [#tpu.dimension_semantics<parallel>, #tpu.dimension_semantics<parallel>, #tpu.dimension_semantics<arbitrary>], iteration_bounds = array<i64: 1, 1, 1>, scalar_prefetch = 0 : i64, scratch_operands = 0 : i64, tpu.core_type = #tpu.core_type<tc>, window_params = [{transform_indices = @transform_0, window_bounds = array<i64: 2, 32, 196>}, {transform_indices = @transform_1, window_bounds = array<i64: 2, 32, 196>}, {transform_indices = @transform_2, window_bounds = array<i64: 2, 32>}, {transform_indices = @transform_3, window_bounds = array<i64: 2, 32>}]} {
    %c0_i32 = arith.constant 0 : i32
    %0 = arith.cmpi eq, %arg2, %c0_i32 : i32
    %1 = arith.extui %0 : i1 to i32
    %c0_i32_0 = arith.constant 0 : i32
    %2 = arith.cmpi ne, %1, %c0_i32_0 : i32
    scf.if %2 {
      %cst_17 = arith.constant 0.000000e+00 : f32
      %16 = vector.broadcast %cst_17 : f32 to vector<2x32xf32>
      %c0_18 = arith.constant 0 : index
      %c0_19 = arith.constant 0 : index
      %17 = vector.load %arg5[%c0_18, %c0_19] : memref<2x32xf32, #tpu.memory_space<vmem>>, vector<2x32xf32>
      tpu.vector_store %arg5[%c0_18, %c0_19], %16 {strides = array<i32>} : memref<2x32xf32, #tpu.memory_space<vmem>>, vector<2x32xf32>,
      %cst_20 = arith.constant 0.000000e+00 : f32
      %18 = vector.broadcast %cst_20 : f32 to vector<2x32xf32>
      %c0_21 = arith.constant 0 : index
      %c0_22 = arith.constant 0 : index
      %19 = vector.load %arg6[%c0_21, %c0_22] : memref<2x32xf32, #tpu.memory_space<vmem>>, vector<2x32xf32>
      tpu.vector_store %arg6[%c0_21, %c0_22], %18 {strides = array<i32>} : memref<2x32xf32, #tpu.memory_space<vmem>>, vector<2x32xf32>,
    } else {
    }
    %c0 = arith.constant 0 : index
    %c0_1 = arith.constant 0 : index
    %c0_2 = arith.constant 0 : index
    %3 = vector.load %arg3[%c0, %c0_1, %c0_2] : memref<2x32x196xf32, #tpu.memory_space<vmem>>, vector<2x32x196xf32>
    %c0_3 = arith.constant 0 : index
    %c0_4 = arith.constant 0 : index
    %c0_5 = arith.constant 0 : index
    %4 = vector.load %arg4[%c0_3, %c0_4, %c0_5] : memref<2x32x196xf32, #tpu.memory_space<vmem>>, vector<2x32x196xf32>
    %c0_6 = arith.constant 0 : index
    %c0_7 = arith.constant 0 : index
    %5 = vector.load %arg5[%c0_6, %c0_7] : memref<2x32xf32, #tpu.memory_space<vmem>>, vector<2x32xf32>
    %cst = arith.constant dense<0.000000e+00> : vector<2x32xf32>
    %6 = vector.multi_reduction <add>, %3, %cst [2] : vector<2x32x196xf32> to vector<2x32xf32>
    %7 = arith.addf %5, %6 : vector<2x32xf32>
    %c0_8 = arith.constant 0 : index
    %c0_9 = arith.constant 0 : index
    %8 = vector.load %arg5[%c0_8, %c0_9] : memref<2x32xf32, #tpu.memory_space<vmem>>, vector<2x32xf32>
    tpu.vector_store %arg5[%c0_8, %c0_9], %7 {strides = array<i32>} : memref<2x32xf32, #tpu.memory_space<vmem>>, vector<2x32xf32>,
    %c0_10 = arith.constant 0 : index
    %c0_11 = arith.constant 0 : index
    %9 = vector.load %arg6[%c0_10, %c0_11] : memref<2x32xf32, #tpu.memory_space<vmem>>, vector<2x32xf32>
    %cst_12 = arith.constant dense<0.000000e+00> : vector<2x32xf32>
    %10 = vector.multi_reduction <add>, %4, %cst_12 [2] : vector<2x32x196xf32> to vector<2x32xf32>
    %11 = arith.addf %9, %10 : vector<2x32xf32>
    %c0_13 = arith.constant 0 : index
    %c0_14 = arith.constant 0 : index
    %12 = vector.load %arg6[%c0_13, %c0_14] : memref<2x32xf32, #tpu.memory_space<vmem>>, vector<2x32xf32>
    tpu.vector_store %arg6[%c0_13, %c0_14], %11 {strides = array<i32>} : memref<2x32xf32, #tpu.memory_space<vmem>>, vector<2x32xf32>,
    %c0_i32_15 = arith.constant 0 : i32
    %13 = arith.cmpi eq, %arg2, %c0_i32_15 : i32
    %14 = arith.extui %13 : i1 to i32
    %c0_i32_16 = arith.constant 0 : i32
    %15 = arith.cmpi ne, %14, %c0_i32_16 : i32
    scf.if %15 {
      %c0_17 = arith.constant 0 : index
      %c0_18 = arith.constant 0 : index
      %16 = vector.load %arg5[%c0_17, %c0_18] : memref<2x32xf32, #tpu.memory_space<vmem>>, vector<2x32xf32>
      %cst_19 = arith.constant 0.00510204071 : f32
      %17 = vector.broadcast %cst_19 : f32 to vector<2x32xf32>
      %18 = arith.mulf %16, %17 : vector<2x32xf32>
      %c0_20 = arith.constant 0 : index
      %c0_21 = arith.constant 0 : index
      %19 = vector.load %arg5[%c0_20, %c0_21] : memref<2x32xf32, #tpu.memory_space<vmem>>, vector<2x32xf32>
      tpu.vector_store %arg5[%c0_20, %c0_21], %18 {strides = array<i32>} : memref<2x32xf32, #tpu.memory_space<vmem>>, vector<2x32xf32>,
      %c0_22 = arith.constant 0 : index
      %c0_23 = arith.constant 0 : index
      %20 = vector.load %arg6[%c0_22, %c0_23] : memref<2x32xf32, #tpu.memory_space<vmem>>, vector<2x32xf32>
      %cst_24 = arith.constant 0.00510204071 : f32
      %21 = vector.broadcast %cst_24 : f32 to vector<2x32xf32>
      %22 = arith.mulf %20, %21 : vector<2x32xf32>
      %c0_25 = arith.constant 0 : index
      %c0_26 = arith.constant 0 : index
      %23 = vector.load %arg6[%c0_25, %c0_26] : memref<2x32xf32, #tpu.memory_space<vmem>>, vector<2x32xf32>
      tpu.vector_store %arg6[%c0_25, %c0_26], %22 {strides = array<i32>} : memref<2x32xf32, #tpu.memory_space<vmem>>, vector<2x32xf32>,
    } else {
    }
    return
  }
  func.func @transform_0(%arg0: i32, %arg1: i32, %arg2: i32) -> (i32, i32, i32) {
    %c0_i32 = arith.constant 0 : i32
    return %arg0, %arg1, %arg2 : i32, i32, i32
  }
  func.func @transform_1(%arg0: i32, %arg1: i32, %arg2: i32) -> (i32, i32, i32) {
    %c0_i32 = arith.constant 0 : i32
    return %arg0, %arg1, %arg2 : i32, i32, i32
  }
  func.func @transform_2(%arg0: i32, %arg1: i32, %arg2: i32) -> (i32, i32) {
    %c0_i32 = arith.constant 0 : i32
    return %arg0, %arg1 : i32, i32
  }
  func.func @transform_3(%arg0: i32, %arg1: i32, %arg2: i32) -> (i32, i32) {
    %c0_i32 = arith.constant 0 : i32
    return %arg0, %arg1 : i32, i32
  }
}

</mosaic_0001>

<llo_original>
// kernel: tpu_custom_call.1
$region0: #{tpu_custom_call.1}
  #allocation0 [shape = 'u32[]', space=smem, size = 0x4, offset = 0x4, fixed_abs, tag = 'smem constant byte address 0x4 - core index']
  #allocation1 [shape = 'u32[144,128]{1,0:T(1,128)}', space=vmem, size = 0x12000, scoped, tag = 'internal scratch']
  %s0 = inlined_call_operand.hbm [shape: f32[2,32,196], index: 0, kind: input, shape index: {}]
  %s1 = inlined_call_operand.hbm [shape: f32[2,32,196], index: 1, kind: input, shape index: {}]
  %s2 = inlined_call_operand.hbm [shape: f32[2,32], index: 2, kind: output, shape index: {0}]
  %s3 = inlined_call_operand.hbm [shape: f32[2,32], index: 3, kind: output, shape index: {1}]
  %4 = xla_tuple %s2, %s3
  %s5 = sld [smem:[#allocation0]]
  $region42: #{tpu_custom_call.1} parent=0
    _
  %s7 = ssub.s32 1, %s5
  %s8 = scalar_select 0, %s7, %s5
  $region1: #{tpu_custom_call.1} parent=0
    #allocation2 [shape = 'u8[65536]{0}', space=vmem, size = 0x10000, scoped, tag = 'input window, operand 0, single buffered']
    #allocation3 [shape = 's32[1]{0}', space=sflag, size = 0x4, scoped, tag = 'scoped memory for tpu_custom_call.1']
    #allocation4 [shape = 's32[1]{0}', space=sflag, size = 0x4, scoped, tag = 'scoped memory for tpu_custom_call.1']
    #allocation5 [shape = 'u8[65536]{0}', space=vmem, size = 0x10000, scoped, tag = 'input window, operand 1, single buffered']
    #allocation6 [shape = 's32[1]{0}', space=sflag, size = 0x4, scoped, tag = 'scoped memory for tpu_custom_call.1']
    #allocation7 [shape = 'u8[1024]{0}', space=vmem, size = 0x400, scoped, tag = 'output window, operand 0, single buffered']
    #allocation8 [shape = 'u8[1024]{0}', space=vmem, size = 0x400, scoped, tag = 'output window, operand 1, single buffered']
    #allocation9 [shape = 's32[1]{0}', space=sflag, size = 0x4, scoped, tag = 'scoped memory for tpu_custom_call.1']
    %9 = vsyncpa [#allocation3], 0
    %10 = vsyncpa [#allocation6], 0
    %11 = vsyncpa [#allocation4], 0
    %12 = vsyncpa [#allocation9], 0
    // Predicated region
    $region2: #{tpu_custom_call.1} parent=1 // pred_check
      _
    $region3: #{tpu_custom_call.1} parent=1 // pred_check_branch
      %14 = sbr.rel (0) target = $region5
    $region4: #{tpu_custom_call.1} parent=1 // pred_region
      %s16 = ssub.s32 2048, 2048
      %17 = vsyncadd [#allocation3], %s16
      %s18 = sshll.u32 [#allocation2], 4
      %s19 = int_to_ptr.vmem [resolvable:$true] %s18
      %24 = dma.hbm_to_vmem [thread:$0]  %s0, 2048, %s19, [#allocation3], 256, 256, 16
    $region5: #{tpu_custom_call.1} parent=1 // pred_fallthru
      _
    // Predicated region
    $region6: #{tpu_custom_call.1} parent=1 // pred_check
      _
    $region7: #{tpu_custom_call.1} parent=1 // pred_check_branch
      %26 = sbr.rel (0) target = $region9
    $region8: #{tpu_custom_call.1} parent=1 // pred_region
      %s28 = ssub.s32 2048, 2048
      %29 = vsyncadd [#allocation6], %s28
      %s30 = sshll.u32 [#allocation5], 4
      %s31 = int_to_ptr.vmem [resolvable:$true] %s30
      %36 = dma.hbm_to_vmem [thread:$0]  %s1, 2048, %s31, [#allocation6], 256, 256, 16
    $region9: #{tpu_custom_call.1} parent=1 // pred_fallthru
      _
    // Predicated region
    $region10: #{tpu_custom_call.1} parent=1 // pred_check
      _
    $region11: #{tpu_custom_call.1} parent=1 // pred_check_branch
      %38 = sbr.rel (0) target = $region13
    $region12: #{tpu_custom_call.1} parent=1 // pred_region
      %39 = dma.done [#allocation3], 2048
    $region13: #{tpu_custom_call.1} parent=1 // pred_fallthru
      _
    // Predicated region
    $region14: #{tpu_custom_call.1} parent=1 // pred_check
      _
    $region15: #{tpu_custom_call.1} parent=1 // pred_check_branch
      %41 = sbr.rel (0) target = $region17
    $region16: #{tpu_custom_call.1} parent=1 // pred_region
      %42 = dma.done [#allocation6], 2048
    $region17: #{tpu_custom_call.1} parent=1 // pred_fallthru
      _
    %p43 = scmp.eq.s32.totalorder 0, 0
    // Predicated region
    $region18: #{tpu_custom_call.1} parent=1 // pred_check
      %p44 = pneg %p43
    $region19: #{tpu_custom_call.1} parent=1 // pred_check_branch
      %46 = sbr.rel (%p44) target = $region21
    $region20: #{tpu_custom_call.1} parent=1 // pred_region
      %vm47 = vcmask 254976
      %48 = vst.msk [vmem:[#allocation7] sm:$0x3] %vm47, 0.0
      %49 = vst.msk [vmem:[#allocation8] sm:$0x3] %vm47, 0.0
    $region21: #{tpu_custom_call.1} parent=1 // pred_fallthru
      _
    %v50 = vld [vmem:[#allocation2] sm:$0xff]
    %v51 = vld [vmem:[#allocation2 + $0x8] sm:$0xff]
    %v52 = vld [vmem:[#allocation2 + $0x10] sm:$0xff]
    %v53 = vld [vmem:[#allocation2 + $0x18] sm:$0xff]
    %v54 = vld [vmem:[#allocation2 + $0x20] sm:$0xff]
    %v55 = vld [vmem:[#allocation2 + $0x28] sm:$0xff]
    %v56 = vld [vmem:[#allocation2 + $0x30] sm:$0xff]
    %v57 = vld [vmem:[#allocation2 + $0x38] sm:$0xff]
    %v58 = vld [vmem:[#allocation2 + $0x40] sm:$0xff]
    %v59 = vld [vmem:[#allocation2 + $0x48] sm:$0xff]
    %v60 = vld [vmem:[#allocation2 + $0x50] sm:$0xff]
    %v61 = vld [vmem:[#allocation2 + $0x58] sm:$0xff]
    %v62 = vld [vmem:[#allocation2 + $0x60] sm:$0xff]
    %v63 = vld [vmem:[#allocation2 + $0x68] sm:$0xff]
    %v64 = vld [vmem:[#allocation2 + $0x70] sm:$0xff]
    %v65 = vld [vmem:[#allocation2 + $0x78] sm:$0xff]
    %v66 = vld [vmem:[#allocation5] sm:$0xff]
    %v67 = vld [vmem:[#allocation5 + $0x8] sm:$0xff]
    %v68 = vld [vmem:[#allocation5 + $0x10] sm:$0xff]
    %v69 = vld [vmem:[#allocation5 + $0x18] sm:$0xff]
    %v70 = vld [vmem:[#allocation5 + $0x20] sm:$0xff]
    %v71 = vld [vmem:[#allocation5 + $0x28] sm:$0xff]
    %v72 = vld [vmem:[#allocation5 + $0x30] sm:$0xff]
    %v73 = vld [vmem:[#allocation5 + $0x38] sm:$0xff]
    %v74 = vld [vmem:[#allocation5 + $0x40] sm:$0xff]
    %v75 = vld [vmem:[#allocation5 + $0x48] sm:$0xff]
    %v76 = vld [vmem:[#allocation5 + $0x50] sm:$0xff]
    %v77 = vld [vmem:[#allocation5 + $0x58] sm:$0xff]
    %v78 = vld [vmem:[#allocation5 + $0x60] sm:$0xff]
    %v79 = vld [vmem:[#allocation5 + $0x68] sm:$0xff]
    %v80 = vld [vmem:[#allocation5 + $0x70] sm:$0xff]
    %v81 = vld [vmem:[#allocation5 + $0x78] sm:$0xff]
    %v82 = vld [vmem:[#allocation7] sm:$0x3]
    %vm83 = vcmask 556032
    %v84 = vsel %vm83, %v51, 0.0
    %v85 = vadd.f32 %v50, %v84
    %86 = vadd.xlane.f32.xlu0 %v85
    %v87 = vpop.xlane.xlu0 %86
    %v88 = vsel %vm83, %v53, 0.0
    %v89 = vadd.f32 %v52, %v88
    %90 = vadd.xlane.f32.xlu0 %v89
    %v91 = vpop.xlane.xlu0 %90
    %v92 = vsel %vm83, %v55, 0.0
    %v93 = vadd.f32 %v54, %v92
    %94 = vadd.xlane.f32.xlu0 %v93
    %v95 = vpop.xlane.xlu0 %94
    %v96 = vsel %vm83, %v57, 0.0
    %v97 = vadd.f32 %v56, %v96
    %98 = vadd.xlane.f32.xlu0 %v97
    %v99 = vpop.xlane.xlu0 %98
    %v100 = vsel %vm83, %v59, 0.0
    %v101 = vadd.f32 %v58, %v100
    %102 = vadd.xlane.f32.xlu0 %v101
    %v103 = vpop.xlane.xlu0 %102
    %v104 = vsel %vm83, %v61, 0.0
    %v105 = vadd.f32 %v60, %v104
    %106 = vadd.xlane.f32.xlu0 %v105
    %v107 = vpop.xlane.xlu0 %106
    %v108 = vsel %vm83, %v63, 0.0
    %v109 = vadd.f32 %v62, %v108
    %110 = vadd.xlane.f32.xlu0 %v109
    %v111 = vpop.xlane.xlu0 %110
    %v112 = vsel %vm83, %v65, 0.0
    %v113 = vadd.f32 %v64, %v112
    %114 = vadd.xlane.f32.xlu0 %v113
    %v115 = vpop.xlane.xlu0 %114
    %v124 = vlaneseq
    %v125 = vand.u32 %v124, 127
    %v126 = vlaneseq
    %v127 = vshrl.u32 %v126, 7
    %v128 = vsub.s32 %v125, %v127
    %v129 = vrot.slane %v87, %v128
    %v130 = vadd.s32 %v125, 4294967288
    %v131 = vlaneseq
    %v132 = vshrl.u32 %v131, 7
    %v133 = vsub.s32 %v130, %v132
    %v134 = vrot.slane %v91, %v133
    %vm135 = vcmask 130112
    %v136 = vsel %vm135, %v134, %v129
    %v137 = vadd.s32 %v125, 4294967280
    %v138 = vlaneseq
    %v139 = vshrl.u32 %v138, 7
    %v140 = vsub.s32 %v137, %v139
    %v141 = vrot.slane %v95, %v140
    %vm142 = vcmask 195712
    %v143 = vsel %vm142, %v141, %v136
    %v144 = vadd.s32 %v125, 4294967272
    %v145 = vlaneseq
    %v146 = vshrl.u32 %v145, 7
    %v147 = vsub.s32 %v144, %v146
    %v148 = vrot.slane %v99, %v147
    %vm149 = vcmask 261312
    %v150 = vsel %vm149, %v148, %v143
    %v151 = vlaneseq
    %v152 = vshrl.u32 %v151, 7
    %v153 = vsub.s32 %v125, %v152
    %v154 = vrot.slane %v103, %v153
    %v155 = vlaneseq
    %v156 = vshrl.u32 %v155, 7
    %v157 = vsub.s32 %v130, %v156
    %v158 = vrot.slane %v107, %v157
    %v159 = vsel %vm135, %v158, %v154
    %v160 = vlaneseq
    %v161 = vshrl.u32 %v160, 7
    %v162 = vsub.s32 %v137, %v161
    %v163 = vrot.slane %v111, %v162
    %v164 = vsel %vm142, %v163, %v159
    %v165 = vlaneseq
    %v166 = vshrl.u32 %v165, 7
    %v167 = vsub.s32 %v144, %v166
    %v168 = vrot.slane %v115, %v167
    %v169 = vsel %vm149, %v168, %v164
    %vm170 = vcmask 1041409
    %v171 = vsel %vm170, %v169, %v150
    %v173 = vadd.f32 %v82, %v171
    %vm174 = vcmask 254976
    %175 = vst.msk [vmem:[#allocation7] sm:$0x3] %vm174, %v173
    %v176 = vld [vmem:[#allocation8] sm:$0x3]
    %v177 = vsel %vm83, %v67, 0.0
    %v178 = vadd.f32 %v66, %v177
    %179 = vadd.xlane.f32.xlu0 %v178
    %v180 = vpop.xlane.xlu0 %179
    %v181 = vsel %vm83, %v69, 0.0
    %v182 = vadd.f32 %v68, %v181
    %183 = vadd.xlane.f32.xlu0 %v182
    %v184 = vpop.xlane.xlu0 %183
    %v185 = vsel %vm83, %v71, 0.0
    %v186 = vadd.f32 %v70, %v185
    %187 = vadd.xlane.f32.xlu0 %v186
    %v188 = vpop.xlane.xlu0 %187
    %v189 = vsel %vm83, %v73, 0.0
    %v190 = vadd.f32 %v72, %v189
    %191 = vadd.xlane.f32.xlu0 %v190
    %v192 = vpop.xlane.xlu0 %191
    %v193 = vsel %vm83, %v75, 0.0
    %v194 = vadd.f32 %v74, %v193
    %195 = vadd.xlane.f32.xlu0 %v194
    %v196 = vpop.xlane.xlu0 %195
    %v197 = vsel %vm83, %v77, 0.0
    %v198 = vadd.f32 %v76, %v197
    %199 = vadd.xlane.f32.xlu0 %v198
    %v200 = vpop.xlane.xlu0 %199
    %v201 = vsel %vm83, %v79, 0.0
    %v202 = vadd.f32 %v78, %v201
    %203 = vadd.xlane.f32.xlu0 %v202
    %v204 = vpop.xlane.xlu0 %203
    %v205 = vsel %vm83, %v81, 0.0
    %v206 = vadd.f32 %v80, %v205
    %207 = vadd.xlane.f32.xlu0 %v206
    %v208 = vpop.xlane.xlu0 %207
    %v217 = vlaneseq
    %v218 = vshrl.u32 %v217, 7
    %v219 = vsub.s32 %v125, %v218
    %v220 = vrot.slane %v180, %v219
    %v221 = vlaneseq
    %v222 = vshrl.u32 %v221, 7
    %v223 = vsub.s32 %v130, %v222
    %v224 = vrot.slane %v184, %v223
    %v225 = vsel %vm135, %v224, %v220
    %v226 = vlaneseq
    %v227 = vshrl.u32 %v226, 7
    %v228 = vsub.s32 %v137, %v227
    %v229 = vrot.slane %v188, %v228
    %v230 = vsel %vm142, %v229, %v225
    %v231 = vlaneseq
    %v232 = vshrl.u32 %v231, 7
    %v233 = vsub.s32 %v144, %v232
    %v234 = vrot.slane %v192, %v233
    %v235 = vsel %vm149, %v234, %v230
    %v236 = vlaneseq
    %v237 = vshrl.u32 %v236, 7
    %v238 = vsub.s32 %v125, %v237
    %v239 = vrot.slane %v196, %v238
    %v240 = vlaneseq
    %v241 = vshrl.u32 %v240, 7
    %v242 = vsub.s32 %v130, %v241
    %v243 = vrot.slane %v200, %v242
    %v244 = vsel %vm135, %v243, %v239
    %v245 = vlaneseq
    %v246 = vshrl.u32 %v245, 7
    %v247 = vsub.s32 %v137, %v246
    %v248 = vrot.slane %v204, %v247
    %v249 = vsel %vm142, %v248, %v244
    %v250 = vlaneseq
    %v251 = vshrl.u32 %v250, 7
    %v252 = vsub.s32 %v144, %v251
    %v253 = vrot.slane %v208, %v252
    %v254 = vsel %vm149, %v253, %v249
    %v255 = vsel %vm170, %v254, %v235
    %v257 = vadd.f32 %v176, %v255
    %258 = vst.msk [vmem:[#allocation8] sm:$0x3] %vm174, %v257
    // Predicated region
    $region22: #{tpu_custom_call.1} parent=1 // pred_check
      %p259 = pneg %p43
    $region23: #{tpu_custom_call.1} parent=1 // pred_check_branch
      %261 = sbr.rel (%p259) target = $region25
    $region24: #{tpu_custom_call.1} parent=1 // pred_region
      %v262 = vld [vmem:[#allocation7] sm:$0x3]
      %v263 = vmul.f32 %v262, 0.0051020407
      %264 = vst.msk [vmem:[#allocation7] sm:$0x3] %vm174, %v263
      %v265 = vld [vmem:[#allocation8] sm:$0x3]
      %v266 = vmul.f32 %v265, 0.0051020407
      %267 = vst.msk [vmem:[#allocation8] sm:$0x3] %vm174, %v266
    $region25: #{tpu_custom_call.1} parent=1 // pred_fallthru
      _
    // Predicated region
    $region26: #{tpu_custom_call.1} parent=1 // pred_check
      _
    $region27: #{tpu_custom_call.1} parent=1 // pred_check_branch
      %269 = sbr.rel (0) target = $region29
    $region28: #{tpu_custom_call.1} parent=1 // pred_region
      %s271 = ssub.s32 32, 32
      %272 = vsyncadd [#allocation4], %s271
      %s274 = sshll.u32 [#allocation7], 4
      %s275 = int_to_ptr.vmem [resolvable:$true] %s274
      %277 = dma.vmem_to_hbm [thread:$0]  %s275, 32, %s2, [#allocation4]
    $region29: #{tpu_custom_call.1} parent=1 // pred_fallthru
      _
    // Predicated region
    $region30: #{tpu_custom_call.1} parent=1 // pred_check
      _
    $region31: #{tpu_custom_call.1} parent=1 // pred_check_branch
      %279 = sbr.rel (0) target = $region33
    $region32: #{tpu_custom_call.1} parent=1 // pred_region
      %s281 = ssub.s32 32, 32
      %282 = vsyncadd [#allocation9], %s281
      %s284 = sshll.u32 [#allocation8], 4
      %s285 = int_to_ptr.vmem [resolvable:$true] %s284
      %287 = dma.vmem_to_hbm [thread:$0]  %s285, 32, %s3, [#allocation9]
    $region33: #{tpu_custom_call.1} parent=1 // pred_fallthru
      _
    // Predicated region
    $region34: #{tpu_custom_call.1} parent=1 // pred_check
      _
    $region35: #{tpu_custom_call.1} parent=1 // pred_check_branch
      %289 = sbr.rel (0) target = $region37
    $region36: #{tpu_custom_call.1} parent=1 // pred_region
      %290 = dma.done [#allocation4], 32
    $region37: #{tpu_custom_call.1} parent=1 // pred_fallthru
      _
    // Predicated region
    $region38: #{tpu_custom_call.1} parent=1 // pred_check
      _
    $region39: #{tpu_custom_call.1} parent=1 // pred_check_branch
      %292 = sbr.rel (0) target = $region41
    $region40: #{tpu_custom_call.1} parent=1 // pred_region
      %293 = dma.done [#allocation9], 32
    $region41: #{tpu_custom_call.1} parent=1 // pred_fallthru
      _
    %294 = vsyncpa [#allocation3], 1
    %295 = vsyncpa [#allocation6], 1
    %296 = vsyncpa [#allocation4], 1
    %297 = vsyncpa [#allocation9], 1

</llo_original>
